<compile_context>
chip_gen: v5e
topology: v5e:2x2
jax: 0.10.0
libtpu: 0.0.40
codegen_flags: <defaults>
</compile_context>

<pallas_src>
import functools

import jax
import jax.numpy as jnp
from jax.experimental import pallas as pl
from jax.experimental.pallas import tpu as pltpu


# ----------------------------------------------------------------------------
# Kernels
# ----------------------------------------------------------------------------
def _revin_norm_kernel(x_ref, w_ref, b_ref, y_ref, mean_ref, stdev_ref, *,
                       eps, inv_l):
    # x_ref: (TB, L, TC)   w_ref/b_ref: (1, 1, TC)
    x = x_ref[...].astype(jnp.float32)

    # Single pass over x for the statistics (var = E[x^2] - mean^2, clamp >= 0).
    # TODO(synk): if bit-accuracy vs PyTorch's two-pass variance matters for
    # series with |mean| >> std, add a second in-VMEM pass sum((x - mean)^2);
    # the block is already resident so it costs no extra HBM traffic.
    s1 = jnp.sum(x, axis=1, keepdims=True)                    # (TB, 1, TC)
    s2 = jnp.sum(x * x, axis=1, keepdims=True)                # (TB, 1, TC)
    mean = s1 * inv_l
    var = jnp.maximum(s2 * inv_l - mean * mean, 0.0)          # unbiased=False
    stdev = jnp.sqrt(var + eps)                               # exact: returned & reused

    # Fold normalize + affine into one per-element FMA; divides are per-(b,c) only.
    scale = w_ref[...] / stdev                                # (TB, 1, TC)
    shift = b_ref[...] - mean * scale                         # (TB, 1, TC)
    # Re-read x for the FMA so the f32 upcast temp need not stay live across
    # the reduction (keeps peak VMEM down for bf16 inputs / large blocks).
    y_ref[...] = (x_ref[...].astype(jnp.float32) * scale + shift).astype(y_ref.dtype)

    mean_ref[...] = mean.astype(mean_ref.dtype)
    stdev_ref[...] = stdev.astype(stdev_ref.dtype)


def _revin_denorm_kernel(x_ref, w_ref, b_ref, mean_ref, stdev_ref, y_ref, *, eps):
    # x_ref: (TB, L, TC)  mean/stdev: (TB, 1, TC)  w/b: (1, 1, TC)
    x = x_ref[...].astype(jnp.float32)
    scale = stdev_ref[...] / (w_ref[...] + eps * eps)         # (TB, 1, TC)
    shift = mean_ref[...] - b_ref[...] * scale                # (TB, 1, TC)
    y_ref[...] = (x * scale + shift).astype(y_ref.dtype)


# ----------------------------------------------------------------------------
# Tiling / compiler-param policy
# ----------------------------------------------------------------------------
_TARGET_BLOCK_BYTES = 2 << 20   # ~2 MiB per x/y block (f32 working precision)
_FULL_C_BYTES = 4 << 20         # keep full C as long as one (1, L, C) f32 row fits
_MIN_GRID_STEPS = 8             # enough steps for pipelining + megacore sharding


def _choose_tiles(B, L, C):
    """Return (TB, TC, n_batch_blocks, n_c_blocks) using cdiv-based tiling."""
    bytes_per_row = L * C * 4  # one batch row, f32 working precision

    # Prefer TC == C: contiguous HBM DMAs, weight/bias never re-fetched.
    if bytes_per_row <= _FULL_C_BYTES:
        TC = C
    else:
        # Last resort for very large L*C: split C on a lane-aligned boundary.
        TC = C
        for tc in (1024, 512, 256, 128):
            if C % tc == 0:
                TC = tc
                break
    nc = pl.cdiv(C, TC)

    # Batch tile from the byte budget; ragged tail is masked by Pallas.
    TB = max(1, min(B, _TARGET_BLOCK_BYTES // max(1, L * TC * 4)))
    nb = pl.cdiv(B, TB)

    # Guarantee enough grid steps for software pipelining (and >=2 parallel
    # batch steps for v7x megacore); prefer an even number of batch steps.
    if nb * nc < _MIN_GRID_STEPS and B > 1:
        want_nb = min(B, max(2, pl.cdiv(_MIN_GRID_STEPS, nc)))
        if want_nb % 2 == 1 and want_nb < B:
            want_nb += 1
        TB = pl.cdiv(B, want_nb)
        nb = pl.cdiv(B, TB)

    return TB, TC, nb, nc


@functools.lru_cache(maxsize=None)
def _compiler_params():
    vmem = 32 * 1024 * 1024  # safe ceiling on v7x (64 MiB physical)
    try:
        kind = jax.devices()[0].device_kind.lower()
        if "v5" in kind or "v6" in kind:
            vmem = 64 * 1024 * 1024  # 128 MiB physical on v5e/v6e
    except Exception:
        pass
    return pltpu.CompilerParams(
        dimension_semantics=("parallel", "parallel"),
        vmem_limit_bytes=vmem,
    )


# ----------------------------------------------------------------------------
# Wrappers
# ----------------------------------------------------------------------------
def revin_norm(x, weight, bias, eps=1e-5):
    """RevIN forward with mode='norm'. Returns (y, mean, stdev)."""
    B, L, C = x.shape
    TB, TC, nb, nc = _choose_tiles(B, L, C)
    w3 = weight.reshape(1, 1, C).astype(jnp.float32)
    b3 = bias.reshape(1, 1, C).astype(jnp.float32)

    kernel = functools.partial(_revin_norm_kernel, eps=float(eps), inv_l=1.0 / L)
    # Grid order (C-blocks, batch-blocks): batch innermost, so the weight/bias
    # block index is constant across consecutive steps if C is ever tiled.
    grid_spec = pltpu.PrefetchScalarGridSpec(
        num_scalar_prefetch=0,
        grid=(nc, nb),
        in_specs=[
            pl.BlockSpec((TB, L, TC), lambda j, i: (i, 0, j)),
            pl.BlockSpec((1, 1, TC), lambda j, i: (0, 0, j)),
            pl.BlockSpec((1, 1, TC), lambda j, i: (0, 0, j)),
        ],
        out_specs=[
            pl.BlockSpec((TB, L, TC), lambda j, i: (i, 0, j)),
            pl.BlockSpec((TB, 1, TC), lambda j, i: (i, 0, j)),
            pl.BlockSpec((TB, 1, TC), lambda j, i: (i, 0, j)),
        ],
    )
    out_shapes = (
        jax.ShapeDtypeStruct((B, L, C), x.dtype),
        # Kept in f32 (more accurate than PyTorch's x.dtype stash; same values
        # for f32 inputs).
        jax.ShapeDtypeStruct((B, 1, C), jnp.float32),
        jax.ShapeDtypeStruct((B, 1, C), jnp.float32),
    )
    return pl.pallas_call(
        kernel,
        out_shape=out_shapes,
        grid_spec=grid_spec,
        compiler_params=_compiler_params(),
    )(x, w3, b3)


def revin_denorm(x, weight, bias, mean, stdev, eps=1e-5):
    """RevIN forward with mode='denorm'."""
    B, L, C = x.shape
    TB, TC, nb, nc = _choose_tiles(B, L, C)
    w3 = weight.reshape(1, 1, C).astype(jnp.float32)
    b3 = bias.reshape(1, 1, C).astype(jnp.float32)
    mean = mean.astype(jnp.float32)
    stdev = stdev.astype(jnp.float32)

    kernel = functools.partial(_revin_denorm_kernel, eps=float(eps))
    grid_spec = pltpu.PrefetchScalarGridSpec(
        num_scalar_prefetch=0,
        grid=(nc, nb),
        in_specs=[
            pl.BlockSpec((TB, L, TC), lambda j, i: (i, 0, j)),
            pl.BlockSpec((1, 1, TC), lambda j, i: (0, 0, j)),
            pl.BlockSpec((1, 1, TC), lambda j, i: (0, 0, j)),
            pl.BlockSpec((TB, 1, TC), lambda j, i: (i, 0, j)),
            pl.BlockSpec((TB, 1, TC), lambda j, i: (i, 0, j)),
        ],
        out_specs=pl.BlockSpec((TB, L, TC), lambda j, i: (i, 0, j)),
    )
    return pl.pallas_call(
        kernel,
        out_shape=jax.ShapeDtypeStruct((B, L, C), x.dtype),
        grid_spec=grid_spec,
        compiler_params=_compiler_params(),
    )(x, w3, b3, mean, stdev)


# ----------------------------------------------------------------------------
# Reference (plain JAX, two-pass like the PyTorch module) for sanity check
# ----------------------------------------------------------------------------
def _ref_norm(x, w, b, eps=1e-5):
    mean = jnp.mean(x, axis=1, keepdims=True)
    var = jnp.mean((x - mean) ** 2, axis=1, keepdims=True)
    stdev = jnp.sqrt(var + eps)
    y = (x - mean) / stdev * w + b
    return y, mean, stdev


def _ref_denorm(x, w, b, mean, stdev, eps=1e-5):
    y = (x - b) / (w + eps * eps)
    return y * stdev + mean


def _run_case(key, B, L, C, eps=1e-5):
    x = jax.random.normal(key, (B, L, C), dtype=jnp.float32) * 3.0 + 1.5
    w = jnp.ones((C,), dtype=jnp.float32)   # matches nn.Parameter(torch.ones)
    b = jnp.zeros((C,), dtype=jnp.float32)  # matches nn.Parameter(torch.zeros)

    y, mean, stdev = revin_norm(x, w, b, eps=eps)
    jax.block_until_ready(y)
    x_rec = revin_denorm(y, w, b, mean, stdev, eps=eps)
    jax.block_until_ready(x_rec)

    y_ref, mean_ref, stdev_ref = _ref_norm(x, w, b, eps)
    x_rec_ref = _ref_denorm(y_ref, w, b, mean_ref, stdev_ref, eps)
    assert jnp.allclose(y, y_ref, atol=1e-4, rtol=1e-4)
    assert jnp.allclose(mean, mean_ref, atol=1e-4, rtol=1e-4)
    assert jnp.allclose(stdev, stdev_ref, atol=1e-4, rtol=1e-4)
    assert jnp.allclose(x_rec, x_rec_ref, atol=1e-4, rtol=1e-4)
    assert jnp.allclose(x_rec, x, atol=1e-3, rtol=1e-3)


if __name__ == "__main__":
    key = jax.random.PRNGKey(0)
    k1, k2 = jax.random.split(key)

    # Case 1: small shape matching the module defaults (B, L, num_features).
    _run_case(k1, B=2, L=8, C=16)

    # Case 2: awkward batch size to exercise cdiv tiling + masked ragged tail.
    _run_case(k2, B=9, L=64, C=7)

    print("KERNEL_OK")
</pallas_src>

<mosaic_0001>
module attributes {stable_mosaic.version = 11 : i64} {
  func.func @_revin_norm_kernel(%arg0: i32, %arg1: i32, %arg2: memref<1x8x16xf32, #tpu.memory_space<vmem>>, %arg3: memref<1x1x16xf32, #tpu.memory_space<vmem>>, %arg4: memref<1x1x16xf32, #tpu.memory_space<vmem>>, %arg5: memref<1x8x16xf32, #tpu.memory_space<vmem>>, %arg6: memref<1x1x16xf32, #tpu.memory_space<vmem>>, %arg7: memref<1x1x16xf32, #tpu.memory_space<vmem>>) attributes {dimension_semantics = [#tpu.dimension_semantics<parallel>, #tpu.dimension_semantics<parallel>], iteration_bounds = array<i64: 1, 2>, scalar_prefetch = 0 : i64, scratch_operands = 0 : i64, tpu.core_type = #tpu.core_type<tc>, window_params = [{transform_indices = @transform_0, window_bounds = array<i64: 1, 8, 16>}, {transform_indices = @transform_1, window_bounds = array<i64: 1, 1, 16>}, {transform_indices = @transform_2, window_bounds = array<i64: 1, 1, 16>}, {transform_indices = @transform_3, window_bounds = array<i64: 1, 8, 16>}, {transform_indices = @transform_4, window_bounds = array<i64: 1, 1, 16>}, {transform_indices = @transform_5, window_bounds = array<i64: 1, 1, 16>}]} {
    %c0 = arith.constant 0 : index
    %c0_0 = arith.constant 0 : index
    %c0_1 = arith.constant 0 : index
    %0 = vector.load %arg2[%c0, %c0_0, %c0_1] : memref<1x8x16xf32, #tpu.memory_space<vmem>>, vector<1x8x16xf32>
    %cst = arith.constant dense<0.000000e+00> : vector<1x16xf32>
    %1 = vector.multi_reduction <add>, %0, %cst [1] : vector<1x8x16xf32> to vector<1x16xf32>
    %2 = vector.shape_cast %1 : vector<1x16xf32> to vector<1x1x16xf32>
    %3 = arith.mulf %0, %0 : vector<1x8x16xf32>
    %cst_2 = arith.constant dense<0.000000e+00> : vector<1x16xf32>
    %4 = vector.multi_reduction <add>, %3, %cst_2 [1] : vector<1x8x16xf32> to vector<1x16xf32>
    %5 = vector.shape_cast %4 : vector<1x16xf32> to vector<1x1x16xf32>
    %cst_3 = arith.constant 1.250000e-01 : f32
    %6 = vector.broadcast %cst_3 : f32 to vector<1x1x16xf32>
    %7 = arith.mulf %2, %6 : vector<1x1x16xf32>
    %cst_4 = arith.constant 1.250000e-01 : f32
    %8 = vector.broadcast %cst_4 : f32 to vector<1x1x16xf32>
    %9 = arith.mulf %5, %8 : vector<1x1x16xf32>
    %10 = arith.mulf %7, %7 : vector<1x1x16xf32>
    %11 = arith.subf %9, %10 : vector<1x1x16xf32>
    %cst_5 = arith.constant 0.000000e+00 : f32
    %12 = vector.broadcast %cst_5 : f32 to vector<1x1x16xf32>
    %13 = arith.maximumf %11, %12 : vector<1x1x16xf32>
    %cst_6 = arith.constant 9.99999974E-6 : f32
    %14 = vector.broadcast %cst_6 : f32 to vector<1x1x16xf32>
    %15 = arith.addf %13, %14 : vector<1x1x16xf32>
    %16 = math.sqrt %15 : vector<1x1x16xf32>
    %c0_7 = arith.constant 0 : index
    %c0_8 = arith.constant 0 : index
    %c0_9 = arith.constant 0 : index
    %17 = vector.load %arg3[%c0_7, %c0_8, %c0_9] : memref<1x1x16xf32, #tpu.memory_space<vmem>>, vector<1x1x16xf32>
    %18 = arith.divf %17, %16 : vector<1x1x16xf32>
    %c0_10 = arith.constant 0 : index
    %c0_11 = arith.constant 0 : index
    %c0_12 = arith.constant 0 : index
    %19 = vector.load %arg4[%c0_10, %c0_11, %c0_12] : memref<1x1x16xf32, #tpu.memory_space<vmem>>, vector<1x1x16xf32>
    %20 = arith.mulf %7, %18 : vector<1x1x16xf32>
    %21 = arith.subf %19, %20 : vector<1x1x16xf32>
    %c0_13 = arith.constant 0 : index
    %c0_14 = arith.constant 0 : index
    %c0_15 = arith.constant 0 : index
    %22 = vector.load %arg2[%c0_13, %c0_14, %c0_15] : memref<1x8x16xf32, #tpu.memory_space<vmem>>, vector<1x8x16xf32>
    %23 = vector.broadcast %18 : vector<1x1x16xf32> to vector<1x8x16xf32>
    %24 = arith.mulf %22, %23 : vector<1x8x16xf32>
    %25 = vector.broadcast %21 : vector<1x1x16xf32> to vector<1x8x16xf32>
    %26 = arith.addf %24, %25 : vector<1x8x16xf32>
    %c0_16 = arith.constant 0 : index
    %c0_17 = arith.constant 0 : index
    %c0_18 = arith.constant 0 : index
    %27 = vector.load %arg5[%c0_16, %c0_17, %c0_18] : memref<1x8x16xf32, #tpu.memory_space<vmem>>, vector<1x8x16xf32>
    tpu.vector_store %arg5[%c0_16, %c0_17, %c0_18], %26 {strides = array<i32>} : memref<1x8x16xf32, #tpu.memory_space<vmem>>, vector<1x8x16xf32>,
    %c0_19 = arith.constant 0 : index
    %c0_20 = arith.constant 0 : index
    %c0_21 = arith.constant 0 : index
    %28 = vector.load %arg6[%c0_19, %c0_20, %c0_21] : memref<1x1x16xf32, #tpu.memory_space<vmem>>, vector<1x1x16xf32>
    tpu.vector_store %arg6[%c0_19, %c0_20, %c0_21], %7 {strides = array<i32>} : memref<1x1x16xf32, #tpu.memory_space<vmem>>, vector<1x1x16xf32>,
    %c0_22 = arith.constant 0 : index
    %c0_23 = arith.constant 0 : index
    %c0_24 = arith.constant 0 : index
    %29 = vector.load %arg7[%c0_22, %c0_23, %c0_24] : memref<1x1x16xf32, #tpu.memory_space<vmem>>, vector<1x1x16xf32>
    tpu.vector_store %arg7[%c0_22, %c0_23, %c0_24], %16 {strides = array<i32>} : memref<1x1x16xf32, #tpu.memory_space<vmem>>, vector<1x1x16xf32>,
    return
  }
  func.func @transform_0(%arg0: i32, %arg1: i32) -> (i32, i32, i32) {
    %c0_i32 = arith.constant 0 : i32
    %c0_i32_0 = arith.constant 0 : i32
    return %arg1, %c0_i32, %arg0 : i32, i32, i32
  }
  func.func @transform_1(%arg0: i32, %arg1: i32) -> (i32, i32, i32) {
    %c0_i32 = arith.constant 0 : i32
    %c0_i32_0 = arith.constant 0 : i32
    %c0_i32_1 = arith.constant 0 : i32
    return %c0_i32, %c0_i32_0, %arg0 : i32, i32, i32
  }
  func.func @transform_2(%arg0: i32, %arg1: i32) -> (i32, i32, i32) {
    %c0_i32 = arith.constant 0 : i32
    %c0_i32_0 = arith.constant 0 : i32
    %c0_i32_1 = arith.constant 0 : i32
    return %c0_i32, %c0_i32_0, %arg0 : i32, i32, i32
  }
  func.func @transform_3(%arg0: i32, %arg1: i32) -> (i32, i32, i32) {
    %c0_i32 = arith.constant 0 : i32
    %c0_i32_0 = arith.constant 0 : i32
    return %arg1, %c0_i32, %arg0 : i32, i32, i32
  }
  func.func @transform_4(%arg0: i32, %arg1: i32) -> (i32, i32, i32) {
    %c0_i32 = arith.constant 0 : i32
    %c0_i32_0 = arith.constant 0 : i32
    return %arg1, %c0_i32, %arg0 : i32, i32, i32
  }
  func.func @transform_5(%arg0: i32, %arg1: i32) -> (i32, i32, i32) {
    %c0_i32 = arith.constant 0 : i32
    %c0_i32_0 = arith.constant 0 : i32
    return %arg1, %c0_i32, %arg0 : i32, i32, i32
  }
}

</mosaic_0001>

<llo_original>
// kernel: tpu_custom_call.1
$region0: #{tpu_custom_call.1}
  #allocation0 [shape = 'u32[]', space=smem, size = 0x4, offset = 0x4, fixed_abs, tag = 'smem constant byte address 0x4 - core index']
  #allocation1 [shape = 'u32[72,128]{1,0:T(1,128)}', space=vmem, size = 0x9000, scoped, tag = 'internal scratch']
  %s0 = inlined_call_operand.hbm [shape: f32[2,8,16], index: 0, kind: input, shape index: {}]
  %s1 = inlined_call_operand.hbm [shape: f32[1,1,16], index: 1, kind: input, shape index: {}]
  %s2 = inlined_call_operand.vmem [shape: f32[1,1,16], index: 2, kind: input, shape index: {}]
  %s3 = inlined_call_operand.hbm [shape: f32[2,8,16], index: 3, kind: output, shape index: {0}]
  %s4 = inlined_call_operand.hbm [shape: f32[2,1,16], index: 4, kind: output, shape index: {1}]
  %s5 = inlined_call_operand.hbm [shape: f32[2,1,16], index: 5, kind: output, shape index: {2}]
  %6 = xla_tuple %s3, %s4, %s5
  %s7 = sld [smem:[#allocation0]]
  $region69: #{tpu_custom_call.1} parent=0
    _
  %s9 = ssub.s32 1, %s7
  %s10 = scalar_select 0, %s9, %s7
  $region1: #{tpu_custom_call.1} parent=0
    #allocation2 [shape = 'u8[8192]{0}', space=vmem, size = 0x2000, scoped, tag = 'input window, operand 0']
    #allocation3 [shape = 's32[2]{0}', space=sflag, size = 0x8, scoped, tag = 'scoped memory for tpu_custom_call.1']
    #allocation4 [shape = 's32[2]{0}', space=sflag, size = 0x8, scoped, tag = 'scoped memory for tpu_custom_call.1']
    #allocation5 [shape = 'u8[512]{0}', space=vmem, size = 0x400, scoped, tag = 'input window, operand 1, single buffered']
    #allocation6 [shape = 's32[1]{0}', space=sflag, size = 0x4, scoped, tag = 'scoped memory for tpu_custom_call.1']
    #allocation7 [shape = 'u8[8192]{0}', space=vmem, size = 0x2000, scoped, tag = 'output window, operand 0']
    #allocation8 [shape = 'u8[1024]{0}', space=vmem, size = 0x400, scoped, tag = 'output window, operand 1']
    #allocation9 [shape = 's32[2]{0}', space=sflag, size = 0x8, scoped, tag = 'scoped memory for tpu_custom_call.1']
    #allocation10 [shape = 'u8[1024]{0}', space=vmem, size = 0x400, scoped, tag = 'output window, operand 2']
    %11 = vsyncpa [#allocation3], 0
    %s12 = scalar_lea.sflag [#allocation3], 1
    %13 = vsyncpa %s12, 0
    %14 = vsyncpa [#allocation6], 0
    %15 = vsyncpa [#allocation4], 0
    %s16 = scalar_lea.sflag [#allocation4], 1
    %17 = vsyncpa %s16, 0
    %18 = vsyncpa [#allocation9], 0
    %s19 = scalar_lea.sflag [#allocation9], 1
    %20 = vsyncpa %s19, 0
    loop: start=0, step=1, limit=4
    $region2: #{tpu_custom_call.1} parent=1 // loop_pre_header
      _
    $region3: #{tpu_custom_call.1} parent=1 // loop_header
      %s22 = sphi 0, %s26
      %p23 = scmp.ge.s32.totalorder %s22, 4
      %s29 = sphi 0, %s41
      %s30 = sphi 0, %s37
      %s31 = sphi 0, %s29
      %s32 = sphi 0, %s30
      %s33 = sphi 0, %s31
      %s34 = sphi 0, %s32
      %s46 = sphi 0, %s48
      %s49 = sphi 0, %s46
      %s50 = sphi 0, %s49
      %s66 = sphi 0, %s50
      %s72 = sphi 0, %s74
      %s75 = sphi 0, %s72
      %s76 = sphi 0, %s75
      %s92 = sphi 0, %s76
      %s98 = sphi 0, %s100
      %s101 = sphi 0, %s98
      %s102 = sphi 0, %s101
      %s118 = sphi 0, %s102
      %s126 = sphi 0, %s128
      %s129 = sphi 0, %s126
      %s130 = sphi 0, %s129
      %s146 = sphi 0, %s130
      %s154 = sphi 0, %s156
      %s157 = sphi 0, %s154
      %s158 = sphi 0, %s157
      %s174 = sphi 0, %s158
      %s182 = sphi 0, %s184
      %s185 = sphi 0, %s182
      %s186 = sphi 0, %s185
      %s202 = sphi 0, %s186
    $region4: #{tpu_custom_call.1} parent=1 // loop_header_branch
      %25 = sbr.rel (%p23) target = $region8
    $region5: #{tpu_custom_call.1} parent=1 // loop_body
      %s27 = ssub.s32 %s22, 1
      %s28 = ssub.s32 %s22, 2
      %s35 = sadd.s32 1, %s30
      %p36 = scmp.ge.s32.totalorder %s35, 2
      %s37 = scalar_select %p36, 0, %s35
      %s38 = sadd.s32 1, %s29
      %s39 = scalar_select %p36, %s38, %s29
      %p40 = scmp.ge.s32.totalorder %s39, 1
      %s41 = scalar_select %p40, 0, %s39
      %s42 = ssub.s32 %s30, %s37
      %s43 = ssub.s32 %s29, %s41
      %s44 = sor.u32 %s42, %s43
      %p45 = scmp.eq.s32.totalorder %s44, 0
      %s47 = sadd.s32 %s46, 1
      %s48 = scalar_select %p45, %s46, %s47
      %p51 = pneg %p45
      %p52 = scmp.eq.s32.totalorder %s22, 1
      %p53 = por %p51, %p52
      %p54 = scmp.ne.s32.totalorder %s46, %s49
      %p55 = scmp.eq.s32.totalorder %s22, 0
      %p56 = por %p54, %p55
      %p57 = scmp.ne.s32.totalorder %s46, %s49
      %p58 = scmp.eq.s32.totalorder %s27, 1
      %p59 = por %p57, %p58
      %p60 = scmp.ne.s32.totalorder %s49, %s50
      %p61 = scmp.eq.s32.totalorder %s27, 0
      %p62 = por %p60, %p61
      %p63 = scmp.ne.s32.totalorder %s49, %s50
      %p64 = scmp.eq.s32.totalorder %s28, 1
      %p65 = por %p63, %p64
      %p67 = scmp.ne.s32.totalorder %s50, %s66
      %p68 = scmp.eq.s32.totalorder %s28, 0
      %p69 = por %p67, %p68
      %s70 = ssub.s32 %s29, %s41
      %p71 = scmp.eq.s32.totalorder %s70, 0
      %s73 = sadd.s32 %s72, 1
      %s74 = scalar_select %p71, %s72, %s73
      %p77 = pneg %p71
      %p78 = scmp.eq.s32.totalorder %s22, 1
      %p79 = por %p77, %p78
      %p80 = scmp.ne.s32.totalorder %s72, %s75
      %p81 = scmp.eq.s32.totalorder %s22, 0
      %p82 = por %p80, %p81
      %p83 = scmp.ne.s32.totalorder %s72, %s75
      %p84 = scmp.eq.s32.totalorder %s27, 1
      %p85 = por %p83, %p84
      %p86 = scmp.ne.s32.totalorder %s75, %s76
      %p87 = scmp.eq.s32.totalorder %s27, 0
      %p88 = por %p86, %p87
      %p89 = scmp.ne.s32.totalorder %s75, %s76
      %p90 = scmp.eq.s32.totalorder %s28, 1
      %p91 = por %p89, %p90
      %p93 = scmp.ne.s32.totalorder %s76, %s92
      %p94 = scmp.eq.s32.totalorder %s28, 0
      %p95 = por %p93, %p94
      %s96 = ssub.s32 %s29, %s41
      %p97 = scmp.eq.s32.totalorder %s96, 0
      %s99 = sadd.s32 %s98, 1
      %s100 = scalar_select %p97, %s98, %s99
      %p103 = pneg %p97
      %p104 = scmp.eq.s32.totalorder %s22, 1
      %p105 = por %p103, %p104
      %p106 = scmp.ne.s32.totalorder %s98, %s101
      %p107 = scmp.eq.s32.totalorder %s22, 0
      %p108 = por %p106, %p107
      %p109 = scmp.ne.s32.totalorder %s98, %s101
      %p110 = scmp.eq.s32.totalorder %s27, 1
      %p111 = por %p109, %p110
      %p112 = scmp.ne.s32.totalorder %s101, %s102
      %p113 = scmp.eq.s32.totalorder %s27, 0
      %p114 = por %p112, %p113
      %p115 = scmp.ne.s32.totalorder %s101, %s102
      %p116 = scmp.eq.s32.totalorder %s28, 1
      %p117 = por %p115, %p116
      %p119 = scmp.ne.s32.totalorder %s102, %s118
      %p120 = scmp.eq.s32.totalorder %s28, 0
      %p121 = por %p119, %p120
      %s122 = ssub.s32 %s30, %s37
      %s123 = ssub.s32 %s29, %s41
      %s124 = sor.u32 %s122, %s123
      %p125 = scmp.eq.s32.totalorder %s124, 0
      %s127 = sadd.s32 %s126, 1
      %s128 = scalar_select %p125, %s126, %s127
      %p131 = pneg %p125
      %p132 = scmp.eq.s32.totalorder %s22, 1
      %p133 = por %p131, %p132
      %p134 = scmp.ne.s32.totalorder %s126, %s129
      %p135 = scmp.eq.s32.totalorder %s22, 0
      %p136 = por %p134, %p135
      %p137 = scmp.ne.s32.totalorder %s126, %s129
      %p138 = scmp.eq.s32.totalorder %s27, 1
      %p139 = por %p137, %p138
      %p140 = scmp.ne.s32.totalorder %s129, %s130
      %p141 = scmp.eq.s32.totalorder %s27, 0
      %p142 = por %p140, %p141
      %p143 = scmp.ne.s32.totalorder %s129, %s130
      %p144 = scmp.eq.s32.totalorder %s28, 1
      %p145 = por %p143, %p144
      %p147 = scmp.ne.s32.totalorder %s130, %s146
      %p148 = scmp.eq.s32.totalorder %s28, 0
      %p149 = por %p147, %p148
      %s150 = ssub.s32 %s30, %s37
      %s151 = ssub.s32 %s29, %s41
      %s152 = sor.u32 %s150, %s151
      %p153 = scmp.eq.s32.totalorder %s152, 0
      %s155 = sadd.s32 %s154, 1
      %s156 = scalar_select %p153, %s154, %s155
      %p159 = pneg %p153
      %p160 = scmp.eq.s32.totalorder %s22, 1
      %p161 = por %p159, %p160
      %p162 = scmp.ne.s32.totalorder %s154, %s157
      %p163 = scmp.eq.s32.totalorder %s22, 0
      %p164 = por %p162, %p163
      %p165 = scmp.ne.s32.totalorder %s154, %s157
      %p166 = scmp.eq.s32.totalorder %s27, 1
      %p167 = por %p165, %p166
      %p168 = scmp.ne.s32.totalorder %s157, %s158
      %p169 = scmp.eq.s32.totalorder %s27, 0
      %p170 = por %p168, %p169
      %p171 = scmp.ne.s32.totalorder %s157, %s158
      %p172 = scmp.eq.s32.totalorder %s28, 1
      %p173 = por %p171, %p172
      %p175 = scmp.ne.s32.totalorder %s158, %s174
      %p176 = scmp.eq.s32.totalorder %s28, 0
      %p177 = por %p175, %p176
      %s178 = ssub.s32 %s30, %s37
      %s179 = ssub.s32 %s29, %s41
      %s180 = sor.u32 %s178, %s179
      %p181 = scmp.eq.s32.totalorder %s180, 0
      %s183 = sadd.s32 %s182, 1
      %s184 = scalar_select %p181, %s182, %s183
      %p187 = pneg %p181
      %p188 = scmp.eq.s32.totalorder %s22, 1
      %p189 = por %p187, %p188
      %p190 = scmp.ne.s32.totalorder %s182, %s185
      %p191 = scmp.eq.s32.totalorder %s22, 0
      %p192 = por %p190, %p191
      %p193 = scmp.ne.s32.totalorder %s182, %s185
      %p194 = scmp.eq.s32.totalorder %s27, 1
      %p195 = por %p193, %p194
      %p196 = scmp.ne.s32.totalorder %s185, %s186
      %p197 = scmp.eq.s32.totalorder %s27, 0
      %p198 = por %p196, %p197
      %p199 = scmp.ne.s32.totalorder %s185, %s186
      %p200 = scmp.eq.s32.totalorder %s28, 1
      %p201 = por %p199, %p200
      %p203 = scmp.ne.s32.totalorder %s186, %s202
      %p204 = scmp.eq.s32.totalorder %s28, 0
      %p205 = por %p203, %p204
      %p206 = scmp.le.s32.totalorder 1, %s22
      %p207 = scmp.lt.s32.totalorder %s22, 3
      %p208 = pnand %p206, %p207
      %p209 = pneg %p208
      // Predicated region
      $region9: #{tpu_custom_call.1} parent=5 // pred_check
        _
      $region10: #{tpu_custom_call.1} parent=5 // pred_check_branch
        %211 = sbr.rel (%p208) target = $region12
      $region11: #{tpu_custom_call.1} parent=5 // pred_region
        %s212 = ssub.s32 %s22, 1
        // Predicated region
        $region13: #{tpu_custom_call.1} parent=11 // pred_check
          %p213 = pneg %p88
        $region14: #{tpu_custom_call.1} parent=11 // pred_check_branch
          %215 = sbr.rel (%p213) target = $region16
        $region15: #{tpu_custom_call.1} parent=11 // pred_region
          %217 = vsyncadd [#allocation6], 0
          %s218 = scalar_lea.hbm %s1, %s31
          %s220 = sshll.u32 %s218, 4
          %s221 = int_to_ptr.hbm [resolvable:$true] %s220
          %s222 = sshll.u32 [#allocation5], 4
          %s223 = int_to_ptr.vmem [resolvable:$true] %s222
          %225 = dma.hbm_to_vmem [thread:$0]  %s221, 16, %s223, [#allocation6]
        $region16: #{tpu_custom_call.1} parent=11 // pred_fallthru
          _
        // Predicated region
        $region17: #{tpu_custom_call.1} parent=11 // pred_check
          %p226 = pneg %p114
        $region18: #{tpu_custom_call.1} parent=11 // pred_check_branch
          %228 = sbr.rel (%p226) target = $region20
        $region19: #{tpu_custom_call.1} parent=11 // pred_region
          %p229 = scmp.lt.s32.totalorder %s31, 0
          %s230 = scalar_select %p229, %s31, 0
          %s231 = scalar_lea.vmem %s2, %s230
        $region20: #{tpu_custom_call.1} parent=11 // pred_fallthru
          _
      $region12: #{tpu_custom_call.1} parent=5 // pred_fallthru
        _
      %p232 = scmp.lt.s32.totalorder %s22, 2
      // Predicated region
      $region21: #{tpu_custom_call.1} parent=5 // pred_check
        %p233 = pneg %p232
      $region22: #{tpu_custom_call.1} parent=5 // pred_check_branch
        %235 = sbr.rel (%p233) target = $region24
      $region23: #{tpu_custom_call.1} parent=5 // pred_region
        // Predicated region
        $region25: #{tpu_custom_call.1} parent=23 // pred_check
          %p236 = pneg %p56
        $region26: #{tpu_custom_call.1} parent=23 // pred_check_branch
          %238 = sbr.rel (%p236) target = $region28
        $region27: #{tpu_custom_call.1} parent=23 // pred_region
          %s239 = sand.u32 %s46, 1
          %s240 = scalar_lea.sflag [#allocation3], %s239
          %s241 = sand.u32 %s46, 1
          %s242 = smul.addr %s241, 8
          %s243 = scalar_lea.vmem [#allocation2], %s242
          %245 = vsyncadd %s240, 0
          %s246 = sadd.s32 %s29, %s30
          %s247 = smul.addr %s246, 8
          %s248 = scalar_lea.hbm %s0, %s247
          %s250 = sshll.u32 %s248, 4
          %s251 = int_to_ptr.hbm [resolvable:$true] %s250
          %s252 = sshll.u32 %s243, 4
          %s253 = int_to_ptr.vmem [resolvable:$true] %s252
          %255 = dma.hbm_to_vmem [thread:$0]  %s251, 128, %s253, %s240
        $region28: #{tpu_custom_call.1} parent=23 // pred_fallthru
          _
      $region24: #{tpu_custom_call.1} parent=5 // pred_fallthru
        _
      %p256 = scmp.le.s32.totalorder 1, %s22
      %p257 = scmp.lt.s32.totalorder %s22, 3
      %p258 = pnand %p256, %p257
      %p259 = pneg %p258
      // Predicated region
      $region29: #{tpu_custom_call.1} parent=5 // pred_check
        _
      $region30: #{tpu_custom_call.1} parent=5 // pred_check_branch
        %261 = sbr.rel (%p258) target = $region32
      $region31: #{tpu_custom_call.1} parent=5 // pred_region
        %s262 = ssub.s32 %s22, 1
        %s263 = sand.u32 %s49, 1
        %s264 = scalar_lea.sflag [#allocation3], %s263
        %s265 = sand.u32 %s49, 1
        %s266 = smul.addr %s265, 8
        %s267 = scalar_lea.vmem [#allocation2], %s266
        // Predicated region
        $region33: #{tpu_custom_call.1} parent=31 // pred_check
          %p268 = pneg %p62
        $region34: #{tpu_custom_call.1} parent=31 // pred_check_branch
          %270 = sbr.rel (%p268) target = $region36
        $region35: #{tpu_custom_call.1} parent=31 // pred_region
          %272 = dma.done %s264, 128
        $region36: #{tpu_custom_call.1} parent=31 // pred_fallthru
          _
        // Predicated region
        $region37: #{tpu_custom_call.1} parent=31 // pred_check
          %p273 = pneg %p88
        $region38: #{tpu_custom_call.1} parent=31 // pred_check_branch
          %275 = sbr.rel (%p273) target = $region40
        $region39: #{tpu_custom_call.1} parent=31 // pred_region
          %277 = dma.done [#allocation6], 16
        $region40: #{tpu_custom_call.1} parent=31 // pred_fallthru
          _
        %s278 = sand.u32 %s49, 1
        %s279 = scalar_lea.sflag [#allocation3], %s278
        %s280 = sand.u32 %s49, 1
        %s281 = smul.addr %s280, 8
        %s282 = scalar_lea.vmem [#allocation2], %s281
        %p283 = pneg %p62
        %p284 = pneg %p59
        %p285 = pneg %p88
        %p286 = pneg %p85
        %p287 = scmp.lt.s32.totalorder %s31, 0
        %s288 = scalar_select %p287, %s31, 0
        %s289 = scalar_lea.vmem %s2, %s288
        %p290 = pneg %p114
        %p291 = pneg %p111
        %p292 = pneg %p142
        %p293 = pneg %p139
        %s294 = sand.u32 %s129, 1
        %s295 = scalar_lea.sflag [#allocation4], %s294
        %s296 = sand.u32 %s129, 1
        %s297 = smul.addr %s296, 8
        %s298 = scalar_lea.vmem [#allocation7], %s297
        %p299 = pneg %p170
        %p300 = pneg %p167
        %s301 = sand.u32 %s27, 1
        %s302 = scalar_lea.sflag [#allocation9], %s301
        %s303 = sand.u32 %s157, 1
        %s304 = scalar_lea.vmem [#allocation8], %s303
        %p305 = pneg %p198
        %p306 = pneg %p195
        %s307 = sand.u32 %s27, 1
        %s308 = scalar_lea.sflag [#allocation9], %s307
        %s309 = sand.u32 %s185, 1
        %s310 = scalar_lea.vmem [#allocation10], %s309
        %p311 = scmp.lt.s32.totalorder %s31, 0
        %s312 = scalar_select %p311, %s31, 0
        %s313 = scalar_lea.vmem %s2, %s312
        %v314 = vld [vmem:[%s267] sm:$0xff]
        %vm315 = vcmask 130048
        %v316 = vsel %vm315, %v314, 0.0
        %v317 = vrot.slane %v316, 4
        %v318 = vadd.f32 %v316, %v317
        %v319 = vrot.slane %v318, 2
        %v320 = vadd.f32 %v318, %v319
        %v321 = vrot.slane %v320, 1
        %v322 = vadd.f32 %v320, %v321
        %v323 = vmul.f32 %v314, %v314
        %v324 = vsel %vm315, %v323, 0.0
        %v325 = vrot.slane %v324, 4
        %v326 = vadd.f32 %v324, %v325
        %v327 = vrot.slane %v326, 2
        %v328 = vadd.f32 %v326, %v327
        %v329 = vrot.slane %v328, 1
        %v330 = vadd.f32 %v328, %v329
        %v331 = vmul.f32 %v322, 0.125
        %v332 = vmul.f32 %v330, 0.125
        %v333 = vmul.f32 %v331, %v331
        %v334 = vsub.f32 %v332, %v333
        %v335 = vmax.f32 %v334, 0.0
        %v336 = vadd.f32 %v335, 1e-05
        %v337 = vrsqrt.pop %v336
        %v338 = vmul.f32 %v337, %v336
        %v339 = vmul.f32 %v338, %v337
        %v340 = vmul.f32 0.5, %v339
        %v341 = vsub.f32 1.5, %v340
        %v342 = vmul.f32 %v337, %v341
        %v343 = vmul.f32 %v336, %v342
        %vm344 = vcmp.eq.f32.partialorder %v336, inf
        %v345 = vsel %vm344, %v336, %v343
        %vm346 = vcmp.eq.f32.partialorder %v336, 0.0
        %v347 = vand.u32 %v336, 2147483648
        %v348 = vsel %vm346, %v347, %v345
        %v349 = vld [vmem:[#allocation5] sm:$0x1]
        %v350 = vrcp.pop %v348
        %v351 = vmul.f32 %v348, %v350
        %v352 = vsub.f32 1.0, %v351
        %v353 = vmul.f32 %v350, %v352
        %v354 = vadd.f32 %v350, %v353
        %vm355 = vweird.f32 %v348
        %vm356 = vweird.f32 %v350
        %vm357 = vmor %vm355, %vm356
        %v358 = vsel %vm357, %v350, %v354
        %v359 = vand.u32 2147483647, %v348
        %vm360 = vcmp.eq.f32.partialorder %v359, 8.507059e+37
        %v361 = vand.u32 %v348, 2147483648
        %v362 = vor.u32 1.1754944e-38, %v361
        %v363 = vsel %vm360, %v362, %v358
        %v364 = vmul.f32 %v349, %v363
        %v365 = vld [vmem:[%s313] sm:$0x1]
        %v366 = vmul.f32 %v331, %v364
        %v367 = vsub.f32 %v365, %v366
        %v369 = vperm.slane %v364, 0
        %v371 = vmul.f32 %v314, %v369
        %v373 = vperm.slane %v367, 0
        %v375 = vadd.f32 %v371, %v373
        %376 = vst.msk [vmem:[%s298] sm:$0xff] %vm315, %v375
        %vm377 = vcmask 122880
        %378 = vst.msk [vmem:[%s304] sm:$0x1] %vm377, %v331
        %379 = vst.msk [vmem:[%s310] sm:$0x1] %vm377, %v348
        %s380 = sand.u32 %s129, 1
        %s381 = scalar_lea.sflag [#allocation4], %s380
        %s382 = sand.u32 %s129, 1
        %s383 = smul.addr %s382, 8
        %s384 = scalar_lea.vmem [#allocation7], %s383
        %s385 = sand.u32 %s27, 1
        %s386 = scalar_lea.sflag [#allocation9], %s385
        %s387 = sand.u32 %s157, 1
        %s388 = scalar_lea.vmem [#allocation8], %s387
        %s389 = sand.u32 %s27, 1
        %s390 = scalar_lea.sflag [#allocation9], %s389
        %s391 = sand.u32 %s185, 1
        %s392 = scalar_lea.vmem [#allocation10], %s391
        // Predicated region
        $region41: #{tpu_custom_call.1} parent=31 // pred_check
          %p393 = pneg %p139
        $region42: #{tpu_custom_call.1} parent=31 // pred_check_branch
          %395 = sbr.rel (%p393) target = $region44
        $region43: #{tpu_custom_call.1} parent=31 // pred_region
          %397 = vsyncadd %s381, 0
          %s398 = sadd.s32 %s31, %s32
          %s399 = smul.addr %s398, 8
          %s400 = scalar_lea.hbm %s3, %s399
          %s402 = sshll.u32 %s384, 4
          %s403 = int_to_ptr.vmem [resolvable:$true] %s402
          %s404 = sshll.u32 %s400, 4
          %s405 = int_to_ptr.hbm [resolvable:$true] %s404
          %407 = dma.vmem_to_hbm [thread:$0]  %s403, 128, %s405, %s381
        $region44: #{tpu_custom_call.1} parent=31 // pred_fallthru
          _
        // Predicated region
        $region45: #{tpu_custom_call.1} parent=31 // pred_check
          %p408 = pneg %p167
        $region46: #{tpu_custom_call.1} parent=31 // pred_check_branch
          %410 = sbr.rel (%p408) target = $region48
        $region47: #{tpu_custom_call.1} parent=31 // pred_region
          %412 = vsyncadd %s386, 0
          %s413 = sadd.s32 %s31, %s32
          %s414 = scalar_lea.hbm %s4, %s413
          %s416 = sshll.u32 %s388, 4
          %s417 = int_to_ptr.vmem [resolvable:$true] %s416
          %s418 = sshll.u32 %s414, 4
          %s419 = int_to_ptr.hbm [resolvable:$true] %s418
          %421 = dma.vmem_to_hbm [thread:$0]  %s417, 16, %s419, %s386
        $region48: #{tpu_custom_call.1} parent=31 // pred_fallthru
          _
        // Predicated region
        $region49: #{tpu_custom_call.1} parent=31 // pred_check
          %p422 = pneg %p195
        $region50: #{tpu_custom_call.1} parent=31 // pred_check_branch
          %424 = sbr.rel (%p422) target = $region52
        $region51: #{tpu_custom_call.1} parent=31 // pred_region
          %426 = vsyncadd %s390, 0
          %s427 = sadd.s32 %s31, %s32
          %s428 = scalar_lea.hbm %s5, %s427
          %s430 = sshll.u32 %s392, 4
          %s431 = int_to_ptr.vmem [resolvable:$true] %s430
          %s432 = sshll.u32 %s428, 4
          %s433 = int_to_ptr.hbm [resolvable:$true] %s432
          %435 = dma.vmem_to_hbm [thread:$0]  %s431, 16, %s433, %s390
        $region52: #{tpu_custom_call.1} parent=31 // pred_fallthru
          _
      $region32: #{tpu_custom_call.1} parent=5 // pred_fallthru
        _
      %p436 = scmp.le.s32.totalorder 2, %s22
      // Predicated region
      $region53: #{tpu_custom_call.1} parent=5 // pred_check
        %p437 = pneg %p436
      $region54: #{tpu_custom_call.1} parent=5 // pred_check_branch
        %439 = sbr.rel (%p437) target = $region56
      $region55: #{tpu_custom_call.1} parent=5 // pred_region
        %s440 = ssub.s32 %s22, 2
        // Predicated region
        $region57: #{tpu_custom_call.1} parent=55 // pred_check
          %p441 = pneg %p145
        $region58: #{tpu_custom_call.1} parent=55 // pred_check_branch
          %443 = sbr.rel (%p441) target = $region60
        $region59: #{tpu_custom_call.1} parent=55 // pred_region
          %s444 = sand.u32 %s130, 1
          %s445 = scalar_lea.sflag [#allocation4], %s444
          %s446 = sand.u32 %s130, 1
          %s447 = smul.addr %s446, 8
          %s448 = scalar_lea.vmem [#allocation7], %s447
          %450 = dma.done %s445, 128
        $region60: #{tpu_custom_call.1} parent=55 // pred_fallthru
          _
        // Predicated region
        $region61: #{tpu_custom_call.1} parent=55 // pred_check
          %p451 = pneg %p173
        $region62: #{tpu_custom_call.1} parent=55 // pred_check_branch
          %453 = sbr.rel (%p451) target = $region64
        $region63: #{tpu_custom_call.1} parent=55 // pred_region
          %s454 = sand.u32 %s28, 1
          %s455 = scalar_lea.sflag [#allocation9], %s454
          %s456 = sand.u32 %s158, 1
          %s457 = scalar_lea.vmem [#allocation8], %s456
          %459 = dma.done %s455, 16
        $region64: #{tpu_custom_call.1} parent=55 // pred_fallthru
          _
        // Predicated region
        $region65: #{tpu_custom_call.1} parent=55 // pred_check
          %p460 = pneg %p201
        $region66: #{tpu_custom_call.1} parent=55 // pred_check_branch
          %462 = sbr.rel (%p460) target = $region68
        $region67: #{tpu_custom_call.1} parent=55 // pred_region
          %s463 = sand.u32 %s28, 1
          %s464 = scalar_lea.sflag [#allocation9], %s463
          %s465 = sand.u32 %s186, 1
          %s466 = scalar_lea.vmem [#allocation10], %s465
          %468 = dma.done %s464, 16
        $region68: #{tpu_custom_call.1} parent=55 // pred_fallthru
          _
      $region56: #{tpu_custom_call.1} parent=5 // pred_fallthru
        _
    $region6: #{tpu_custom_call.1} parent=1 // loop_footer
      %s26 = sadd.s32 1, %s22
    $region7: #{tpu_custom_call.1} parent=1 // loop_footer_branch
      %21 = sbr.rel target = $region3
    $region8: #{tpu_custom_call.1} parent=1 // loop_exit
      _
    %469 = vsyncpa [#allocation3], 1
    %s470 = scalar_lea.sflag [#allocation3], 1
    %471 = vsyncpa %s470, 1
    %472 = vsyncpa [#allocation6], 1
    %473 = vsyncpa [#allocation4], 1
    %s474 = scalar_lea.sflag [#allocation4], 1
    %475 = vsyncpa %s474, 1
    %476 = vsyncpa [#allocation9], 1
    %s477 = scalar_lea.sflag [#allocation9], 1
    %478 = vsyncpa %s477, 1

</llo_original>
